<compile_context>
chip_gen: v5e
topology: v5e:2x2
jax: 0.10.0
libtpu: 0.0.40
codegen_flags: <defaults>
</compile_context>

<pallas_src>
import jax
import jax.numpy as jnp
from jax.experimental import pallas as pl
from jax.experimental.pallas import tpu as pltpu

INPUT_SIZE = 3
OUTPUT_SIZE = 2

_LANES = 128                      # TPU lane width
_SUBLANES = 8                     # f32 sublane tile
_MAX_S_TILE = 2048                # sublane rows per grid step (~3 MiB input)
_PALLAS_MIN_BATCH = 4096          # below this, fused XLA matmul wins


def _round_up(n, m):
    return ((n + m - 1) // m) * m


def linear_kernel(w_ref, b_ref, x_ref, o_ref):
    """y[j] = sum_k x[k] * w[j, k] + b[j], fully dense VPU MACs.

    w_ref : SMEM (OUTPUT_SIZE * INPUT_SIZE,) f32, row-major PyTorch (out, in)
    b_ref : SMEM (OUTPUT_SIZE,) f32
    x_ref : VMEM (INPUT_SIZE, S_TILE, 128) f32  -- batch in (sublane, lane)
    o_ref : VMEM (OUTPUT_SIZE, S_TILE, 128) f32
    """
    for j in range(OUTPUT_SIZE):                     # unrolled: 2 output rows
        y = x_ref[0] * w_ref[j * INPUT_SIZE + 0]     # (S_TILE, 128) dense
        for k in range(1, INPUT_SIZE):               # unrolled: 3 MACs / row
            y = y + x_ref[k] * w_ref[j * INPUT_SIZE + k]
        o_ref[j] = y + b_ref[j]                      # direct dense vst


def _pallas_linear(x, weight, bias):
    """Pallas path. x: (B, 3) f32 -> (B, 2) f32."""
    B = x.shape[0]
    # Pad batch to a multiple of 8*128 so the (sublane, lane) repack is exact.
    b_pad = _round_up(max(B, 1), _SUBLANES * _LANES)

    x_t = x.astype(jnp.float32).T                    # (in, B): batch -> lanes
    if b_pad != B:
        x_t = jnp.pad(x_t, ((0, 0), (0, b_pad - B)))

    S = b_pad // _LANES                              # sublane rows (mult of 8)
    x3 = x_t.reshape(INPUT_SIZE, S, _LANES)          # (3, S, 128) dense tiles

    s_tile = min(_MAX_S_TILE, S)                     # multiple of 8 by constr.
    grid = (pl.cdiv(S, s_tile),)

    w_flat = weight.astype(jnp.float32).reshape(-1)  # (out*in,) -> SMEM
    b_vec = bias.astype(jnp.float32).reshape(-1)     # (out,)    -> SMEM

    out3 = pl.pallas_call(
        linear_kernel,
        out_shape=jax.ShapeDtypeStruct((OUTPUT_SIZE, S, _LANES), jnp.float32),
        grid_spec=pltpu.PrefetchScalarGridSpec(
            num_scalar_prefetch=2,                   # w_flat, b_vec -> SMEM
            grid=grid,
            in_specs=[
                pl.BlockSpec((INPUT_SIZE, s_tile, _LANES),
                             lambda i, w, b: (0, i, 0)),
            ],
            out_specs=pl.BlockSpec((OUTPUT_SIZE, s_tile, _LANES),
                                   lambda i, w, b: (0, i, 0)),
        ),
        compiler_params=pltpu.CompilerParams(
            dimension_semantics=("parallel",),       # v7x: shard across 2 TCs
            vmem_limit_bytes=32 * 1024 * 1024,       # safe on v7x's 64 MiB VMEM
        ),
    )(w_flat, b_vec, x3)

    out_t = out3.reshape(OUTPUT_SIZE, b_pad)         # (2, B_pad) lane-dense
    return out_t[:, :B].T                            # back to (B, out)


def simple_model_forward(x, weight, bias, *, force_pallas=False):
    """x: (B, 3); weight: (2, 3) (PyTorch layout); bias: (2,)."""
    B = x.shape[0]
    if not force_pallas and B < _PALLAS_MIN_BATCH:
        # Small batches: single fused XLA pass beats the Pallas dispatch
        # (launch + transpose + pad overhead dominates at tiny B).
        return x.astype(jnp.float32) @ weight.astype(jnp.float32).T \
            + bias.astype(jnp.float32)
    return _pallas_linear(x, weight, bias)


def init_params(key):
    # Deterministic init mimicking nn.Linear's uniform(-1/sqrt(in), 1/sqrt(in)).
    k_w, k_b = jax.random.split(key)
    bound = 1.0 / jnp.sqrt(jnp.float32(INPUT_SIZE))
    weight = jax.random.uniform(
        k_w, (OUTPUT_SIZE, INPUT_SIZE), jnp.float32, minval=-bound, maxval=bound
    )
    bias = jax.random.uniform(
        k_b, (OUTPUT_SIZE,), jnp.float32, minval=-bound, maxval=bound
    )
    return weight, bias


if __name__ == "__main__":
    key = jax.random.PRNGKey(0)
    k_x, k_x2, k_x3, k_p = jax.random.split(key, 4)
    weight, bias = init_params(k_p)

    # 1) Small batch through the XLA small-batch dispatch path.
    batch = 8
    x = jax.random.normal(k_x, (batch, INPUT_SIZE), dtype=jnp.float32)
    ref = x @ weight.T + bias
    out = jax.block_until_ready(simple_model_forward(x, weight, bias))
    assert out.shape == (batch, OUTPUT_SIZE)
    assert jnp.allclose(out, ref, atol=1e-5, rtol=1e-5)

    # 2) Same small batch forced through the Pallas kernel
    #    (padded 8 -> 1024 rows, S=8, single grid step).
    out_p = jax.block_until_ready(
        simple_model_forward(x, weight, bias, force_pallas=True))
    assert out_p.shape == (batch, OUTPUT_SIZE)
    assert jnp.allclose(out_p, ref, atol=1e-5, rtol=1e-5)

    # 3) Ragged batch through the Pallas kernel (600 -> pad 1024, S=8).
    batch2 = 600
    x2 = jax.random.normal(k_x2, (batch2, INPUT_SIZE), dtype=jnp.float32)
    ref2 = x2 @ weight.T + bias
    out2 = jax.block_until_ready(
        simple_model_forward(x2, weight, bias, force_pallas=True))
    assert out2.shape == (batch2, OUTPUT_SIZE)
    assert jnp.allclose(out2, ref2, atol=1e-5, rtol=1e-5)

    # 4) Multi-step grid with a partial trailing block (exercises pl.cdiv path):
    #    2500 rows -> pad 3072, S=24; shrink the tile cap locally to force
    #    grid = cdiv(24, 16) = 2 with a partial last block.
    batch3 = 2500
    x3 = jax.random.normal(k_x3, (batch3, INPUT_SIZE), dtype=jnp.float32)
    ref3 = x3 @ weight.T + bias
    _saved_tile = _MAX_S_TILE
    _MAX_S_TILE = 16
    out3 = jax.block_until_ready(_pallas_linear(x3, weight, bias))
    _MAX_S_TILE = _saved_tile
    assert out3.shape == (batch3, OUTPUT_SIZE)
    assert jnp.allclose(out3, ref3, atol=1e-5, rtol=1e-5)

    print("KERNEL_OK")
</pallas_src>

<mosaic_0001>
module attributes {stable_mosaic.version = 11 : i64} {
  func.func @linear_kernel(%arg0: i32, %arg1: memref<6xf32, #tpu.memory_space<smem>>, %arg2: memref<2xf32, #tpu.memory_space<smem>>, %arg3: memref<3x8x128xf32, #tpu.memory_space<vmem>>, %arg4: memref<2x8x128xf32, #tpu.memory_space<vmem>>) attributes {dimension_semantics = [#tpu.dimension_semantics<parallel>], iteration_bounds = array<i64: 1>, scalar_prefetch = 2 : i64, scratch_operands = 0 : i64, tpu.core_type = #tpu.core_type<tc>, window_params = [{transform_indices = @transform_0, window_bounds = array<i64: 3, 8, 128>}, {transform_indices = @transform_1, window_bounds = array<i64: 2, 8, 128>}]} {
    %c0 = arith.constant 0 : index
    %c0_0 = arith.constant 0 : index
    %c0_1 = arith.constant 0 : index
    %0 = vector.load %arg3[%c0, %c0_0, %c0_1] : memref<3x8x128xf32, #tpu.memory_space<vmem>>, vector<1x8x128xf32>
    %1 = vector.shape_cast %0 : vector<1x8x128xf32> to vector<8x128xf32>
    %c0_2 = arith.constant 0 : index
    %2 = memref.load %arg1[%c0_2] : memref<6xf32, #tpu.memory_space<smem>>
    %3 = vector.broadcast %2 : f32 to vector<8x128xf32>
    %4 = arith.mulf %1, %3 : vector<8x128xf32>
    %c1 = arith.constant 1 : index
    %c0_3 = arith.constant 0 : index
    %c0_4 = arith.constant 0 : index
    %5 = vector.load %arg3[%c1, %c0_3, %c0_4] : memref<3x8x128xf32, #tpu.memory_space<vmem>>, vector<1x8x128xf32>
    %6 = vector.shape_cast %5 : vector<1x8x128xf32> to vector<8x128xf32>
    %c1_5 = arith.constant 1 : index
    %7 = memref.load %arg1[%c1_5] : memref<6xf32, #tpu.memory_space<smem>>
    %8 = vector.broadcast %7 : f32 to vector<8x128xf32>
    %9 = arith.mulf %6, %8 : vector<8x128xf32>
    %10 = arith.addf %4, %9 : vector<8x128xf32>
    %c2 = arith.constant 2 : index
    %c0_6 = arith.constant 0 : index
    %c0_7 = arith.constant 0 : index
    %11 = vector.load %arg3[%c2, %c0_6, %c0_7] : memref<3x8x128xf32, #tpu.memory_space<vmem>>, vector<1x8x128xf32>
    %12 = vector.shape_cast %11 : vector<1x8x128xf32> to vector<8x128xf32>
    %c2_8 = arith.constant 2 : index
    %13 = memref.load %arg1[%c2_8] : memref<6xf32, #tpu.memory_space<smem>>
    %14 = vector.broadcast %13 : f32 to vector<8x128xf32>
    %15 = arith.mulf %12, %14 : vector<8x128xf32>
    %16 = arith.addf %10, %15 : vector<8x128xf32>
    %c0_9 = arith.constant 0 : index
    %17 = memref.load %arg2[%c0_9] : memref<2xf32, #tpu.memory_space<smem>>
    %18 = vector.broadcast %17 : f32 to vector<8x128xf32>
    %19 = arith.addf %16, %18 : vector<8x128xf32>
    %c0_10 = arith.constant 0 : index
    %c0_11 = arith.constant 0 : index
    %c0_12 = arith.constant 0 : index
    %20 = vector.load %arg4[%c0_10, %c0_11, %c0_12] : memref<2x8x128xf32, #tpu.memory_space<vmem>>, vector<1x8x128xf32>
    %21 = vector.shape_cast %20 : vector<1x8x128xf32> to vector<8x128xf32>
    %22 = vector.shape_cast %19 : vector<8x128xf32> to vector<1x8x128xf32>
    tpu.vector_store %arg4[%c0_10, %c0_11, %c0_12], %22 {strides = array<i32>} : memref<2x8x128xf32, #tpu.memory_space<vmem>>, vector<1x8x128xf32>,
    %c0_13 = arith.constant 0 : index
    %c0_14 = arith.constant 0 : index
    %c0_15 = arith.constant 0 : index
    %23 = vector.load %arg3[%c0_13, %c0_14, %c0_15] : memref<3x8x128xf32, #tpu.memory_space<vmem>>, vector<1x8x128xf32>
    %24 = vector.shape_cast %23 : vector<1x8x128xf32> to vector<8x128xf32>
    %c3 = arith.constant 3 : index
    %25 = memref.load %arg1[%c3] : memref<6xf32, #tpu.memory_space<smem>>
    %26 = vector.broadcast %25 : f32 to vector<8x128xf32>
    %27 = arith.mulf %24, %26 : vector<8x128xf32>
    %c1_16 = arith.constant 1 : index
    %c0_17 = arith.constant 0 : index
    %c0_18 = arith.constant 0 : index
    %28 = vector.load %arg3[%c1_16, %c0_17, %c0_18] : memref<3x8x128xf32, #tpu.memory_space<vmem>>, vector<1x8x128xf32>
    %29 = vector.shape_cast %28 : vector<1x8x128xf32> to vector<8x128xf32>
    %c4 = arith.constant 4 : index
    %30 = memref.load %arg1[%c4] : memref<6xf32, #tpu.memory_space<smem>>
    %31 = vector.broadcast %30 : f32 to vector<8x128xf32>
    %32 = arith.mulf %29, %31 : vector<8x128xf32>
    %33 = arith.addf %27, %32 : vector<8x128xf32>
    %c2_19 = arith.constant 2 : index
    %c0_20 = arith.constant 0 : index
    %c0_21 = arith.constant 0 : index
    %34 = vector.load %arg3[%c2_19, %c0_20, %c0_21] : memref<3x8x128xf32, #tpu.memory_space<vmem>>, vector<1x8x128xf32>
    %35 = vector.shape_cast %34 : vector<1x8x128xf32> to vector<8x128xf32>
    %c5 = arith.constant 5 : index
    %36 = memref.load %arg1[%c5] : memref<6xf32, #tpu.memory_space<smem>>
    %37 = vector.broadcast %36 : f32 to vector<8x128xf32>
    %38 = arith.mulf %35, %37 : vector<8x128xf32>
    %39 = arith.addf %33, %38 : vector<8x128xf32>
    %c1_22 = arith.constant 1 : index
    %40 = memref.load %arg2[%c1_22] : memref<2xf32, #tpu.memory_space<smem>>
    %41 = vector.broadcast %40 : f32 to vector<8x128xf32>
    %42 = arith.addf %39, %41 : vector<8x128xf32>
    %c1_23 = arith.constant 1 : index
    %c0_24 = arith.constant 0 : index
    %c0_25 = arith.constant 0 : index
    %43 = vector.load %arg4[%c1_23, %c0_24, %c0_25] : memref<2x8x128xf32, #tpu.memory_space<vmem>>, vector<1x8x128xf32>
    %44 = vector.shape_cast %43 : vector<1x8x128xf32> to vector<8x128xf32>
    %45 = vector.shape_cast %42 : vector<8x128xf32> to vector<1x8x128xf32>
    tpu.vector_store %arg4[%c1_23, %c0_24, %c0_25], %45 {strides = array<i32>} : memref<2x8x128xf32, #tpu.memory_space<vmem>>, vector<1x8x128xf32>,
    return
  }
  func.func @transform_0(%arg0: i32, %arg1: memref<6xf32, #tpu.memory_space<smem>>, %arg2: memref<2xf32, #tpu.memory_space<smem>>) -> (i32, i32, i32) {
    %c0_i32 = arith.constant 0 : i32
    %c0_i32_0 = arith.constant 0 : i32
    %c0_i32_1 = arith.constant 0 : i32
    return %c0_i32, %arg0, %c0_i32_0 : i32, i32, i32
  }
  func.func @transform_1(%arg0: i32, %arg1: memref<6xf32, #tpu.memory_space<smem>>, %arg2: memref<2xf32, #tpu.memory_space<smem>>) -> (i32, i32, i32) {
    %c0_i32 = arith.constant 0 : i32
    %c0_i32_0 = arith.constant 0 : i32
    %c0_i32_1 = arith.constant 0 : i32
    return %c0_i32, %arg0, %c0_i32_0 : i32, i32, i32
  }
}

</mosaic_0001>

<llo_original>
// kernel: tpu_custom_call.1
$region0: #{tpu_custom_call.1}
  #allocation0 [shape = 'u32[]', space=smem, size = 0x4, offset = 0x4, fixed_abs, tag = 'smem constant byte address 0x4 - core index']
  #allocation1 [shape = 'u32[72,128]{1,0:T(1,128)}', space=vmem, size = 0x9000, scoped, tag = 'internal scratch']
  #allocation2 [shape = 's32[1]{0}', space=sflag, size = 0x4, scoped, tag = 'scoped memory for tpu_custom_call.1']
  #allocation3 [shape = 'u8[512]{0}', space=smem, size = 0x200, scoped, tag = 'prefetched SMEM operand 0']
  #allocation4 [shape = 'u8[512]{0}', space=smem, size = 0x200, scoped, tag = 'prefetched SMEM operand 1']
  %s0 = inlined_call_operand.hbm [shape: f32[6], index: 0, kind: input, shape index: {}]
  %s1 = inlined_call_operand.hbm [shape: f32[2], index: 1, kind: input, shape index: {}]
  %s2 = inlined_call_operand.hbm [shape: f32[3,8,128], index: 2, kind: input, shape index: {}]
  %s3 = inlined_call_operand.hbm [shape: f32[2,8,128], index: 3, kind: output, shape index: {}]
  %s4 = sld [smem:[#allocation0]]
  $region18: #{tpu_custom_call.1} parent=0
    _
  %s6 = ssub.s32 1, %s4
  %s7 = scalar_select 0, %s6, %s4
  %s9 = sshll.u32 %s0, 4
  %s10 = int_to_ptr.hbm [resolvable:$true] %s9
  %12 = dma.hbm_to_smem %s10, 16, [#allocation3], [#allocation2]
  %s14 = sshll.u32 %s1, 4
  %s15 = int_to_ptr.hbm [resolvable:$true] %s14
  %17 = dma.hbm_to_smem %s15, 16, [#allocation4], [#allocation2]
  %19 = dma.done [#allocation2], 32
  %20 = sfence
  $region1: #{tpu_custom_call.1} parent=0
    #allocation5 [shape = 'u8[12288]{0}', space=vmem, size = 0x3000, scoped, tag = 'input window, operand 2, single buffered']
    #allocation6 [shape = 's32[1]{0}', space=sflag, size = 0x4, scoped, tag = 'scoped memory for tpu_custom_call.1']
    #allocation7 [shape = 's32[1]{0}', space=sflag, size = 0x4, scoped, tag = 'scoped memory for tpu_custom_call.1']
    #allocation8 [shape = 'u8[8192]{0}', space=vmem, size = 0x2000, scoped, tag = 'output window, operand 0, single buffered']
    %21 = vsyncpa [#allocation6], 0
    %22 = vsyncpa [#allocation7], 0
    // Predicated region
    $region2: #{tpu_custom_call.1} parent=1 // pred_check
      _
    $region3: #{tpu_custom_call.1} parent=1 // pred_check_branch
      %24 = sbr.rel (0) target = $region5
    $region4: #{tpu_custom_call.1} parent=1 // pred_region
      %26 = vsyncadd [#allocation6], 0
      %s27 = sshll.u32 %s2, 4
      %s28 = int_to_ptr.hbm [resolvable:$true] %s27
      %s29 = sshll.u32 [#allocation5], 4
      %s30 = int_to_ptr.vmem [resolvable:$true] %s29
      %35 = dma.hbm_to_vmem [thread:$0]  %s28, 384, %s30, [#allocation6], 128, 128, 8
    $region5: #{tpu_custom_call.1} parent=1 // pred_fallthru
      _
    // Predicated region
    $region6: #{tpu_custom_call.1} parent=1 // pred_check
      _
    $region7: #{tpu_custom_call.1} parent=1 // pred_check_branch
      %37 = sbr.rel (0) target = $region9
    $region8: #{tpu_custom_call.1} parent=1 // pred_region
      %39 = dma.done [#allocation6], 384
    $region9: #{tpu_custom_call.1} parent=1 // pred_fallthru
      _
    %v40 = vld [vmem:[#allocation5] sm:$0xff]
    %s41 = sld [smem:[#allocation3]]
    %v42 = vstv %s41
    %v43 = vmul.f32 %v40, %v42
    %s44 = scalar_lea.vmem [#allocation5], 8
    %v45 = vld [vmem:[%s44] sm:$0xff]
    %s46 = sld [smem:[#allocation3 + $0x1]]
    %v47 = vstv %s46
    %v48 = vmul.f32 %v45, %v47
    %v49 = vadd.f32 %v43, %v48
    %s50 = scalar_lea.vmem [#allocation5], 16
    %v51 = vld [vmem:[%s50] sm:$0xff]
    %s52 = sld [smem:[#allocation3 + $0x2]]
    %v53 = vstv %s52
    %v54 = vmul.f32 %v51, %v53
    %v55 = vadd.f32 %v49, %v54
    %s56 = sld [smem:[#allocation4]]
    %v57 = vstv %s56
    %v58 = vadd.f32 %v55, %v57
    %59 = vst [vmem:[#allocation8] sm:$0xff] %v58
    %v60 = vld [vmem:[#allocation5] sm:$0xff]
    %s61 = sld [smem:[#allocation3 + $0x3]]
    %v62 = vstv %s61
    %v63 = vmul.f32 %v60, %v62
    %v64 = vld [vmem:[%s44] sm:$0xff]
    %s65 = sld [smem:[#allocation3 + $0x4]]
    %v66 = vstv %s65
    %v67 = vmul.f32 %v64, %v66
    %v68 = vadd.f32 %v63, %v67
    %v69 = vld [vmem:[%s50] sm:$0xff]
    %s70 = sld [smem:[#allocation3 + $0x5]]
    %v71 = vstv %s70
    %v72 = vmul.f32 %v69, %v71
    %v73 = vadd.f32 %v68, %v72
    %s74 = sld [smem:[#allocation4 + $0x1]]
    %v75 = vstv %s74
    %v76 = vadd.f32 %v73, %v75
    %s77 = scalar_lea.vmem [#allocation8], 8
    %78 = vst [vmem:[%s77] sm:$0xff] %v76
    // Predicated region
    $region10: #{tpu_custom_call.1} parent=1 // pred_check
      _
    $region11: #{tpu_custom_call.1} parent=1 // pred_check_branch
      %80 = sbr.rel (0) target = $region13
    $region12: #{tpu_custom_call.1} parent=1 // pred_region
      %82 = vsyncadd [#allocation7], 0
      %s83 = sshll.u32 [#allocation8], 4
      %s84 = int_to_ptr.vmem [resolvable:$true] %s83
      %s85 = sshll.u32 %s3, 4
      %s86 = int_to_ptr.hbm [resolvable:$true] %s85
      %91 = dma.vmem_to_hbm [thread:$0]  %s84, 256, %s86, [#allocation7], 128, 128, 8
    $region13: #{tpu_custom_call.1} parent=1 // pred_fallthru
      _
    // Predicated region
    $region14: #{tpu_custom_call.1} parent=1 // pred_check
      _
    $region15: #{tpu_custom_call.1} parent=1 // pred_check_branch
      %93 = sbr.rel (0) target = $region17
    $region16: #{tpu_custom_call.1} parent=1 // pred_region
      %95 = dma.done [#allocation7], 256
    $region17: #{tpu_custom_call.1} parent=1 // pred_fallthru
      _
    %96 = vsyncpa [#allocation6], 1
    %97 = vsyncpa [#allocation7], 1

</llo_original>
